<compile_context>
chip_gen: v7x
topology: tpu7x:2x2x1
jax: 0.10.0
libtpu: 0.0.40
codegen_flags: <defaults>
</compile_context>

<pallas_src>
import functools
import math

import jax
import jax.numpy as jnp
from jax import lax
from jax.experimental import pallas as pl
from jax.experimental.pallas import tpu as pltpu


# ------------------------------ fused kernel ------------------------------- #

def _fused_gate_attention_kernel(x_ref, w_ref, att_ref, out_ref, *,
                                 from_len, to_len):
    """One (batch, from-tile) block.

    x_ref   : (1, Sx, Daug)  gate inputs [tensor || pos || 1] for this block
              Sx = f_tile            if to_len == 1    (from-gate)
              Sx = to_len            if from_len == 1  (to-gate; shared by tiles)
              Sx = f_tile * to_len   otherwise         (full 2-D gate)
    w_ref   : (H, Daug)      [Wg || Wp || bias]  (gains + gate_bias folded in)
    att_ref : (1, H, Ft, T_att)
    out_ref : (1, H, Ft, T_att)
    """
    x = x_ref[0]            # (Sx, Daug)
    w = w_ref[...]          # (H, Daug)
    H = att_ref.shape[1]
    Ft = att_ref.shape[2]
    T = att_ref.shape[3]

    if to_len == 1:
        # Gate value per (head, from-row): compute logits as (Sx, H) so each
        # head's column slices out as a (Ft, 1) that lane-broadcasts over T.
        logits = lax.dot_general(x, w, (((1,), (1,)), ((), ())),
                                 preferred_element_type=jnp.float32)   # (Sx, H)
        gate = jax.nn.sigmoid(logits).astype(out_ref.dtype)
        for h in range(H):
            out_ref[0, h] = att_ref[0, h] * gate[:, h:h + 1]           # (Ft,T)*(Ft,1)
    else:
        # Gate value per (head, to-col): compute logits lane-dense as (H, Sx).
        logits = lax.dot_general(w, x, (((1,), (1,)), ((), ())),
                                 preferred_element_type=jnp.float32)   # (H, Sx)
        gate = jax.nn.sigmoid(logits).astype(out_ref.dtype)
        if from_len == 1:
            for h in range(H):
                out_ref[0, h] = att_ref[0, h] * gate[h:h + 1, :]       # (Ft,T)*(1,T)
        else:
            # TODO(synk): full 2-D gate (from_len>1 AND to_len>1) needs a
            # per-head (1, Ft*T) -> (Ft, T) relayout; GANsformer/PixelFace only
            # use from-gates (to_len==1) or to-gates (from_len==1).
            for h in range(H):
                out_ref[0, h] = att_ref[0, h] * gate[h:h + 1, :].reshape(Ft, T)


# ------------------------------- tiling ------------------------------------ #

def _pick_from_tile(f_att, bytes_per_from_row, budget_bytes=2 << 20):
    """Largest multiple-of-8 divisor of f_att whose att block fits the budget."""
    if f_att % 8 != 0:
        return f_att                       # must take the full dim (BlockSpec rule)
    cands = [f for f in range(8, f_att + 1, 8) if f_att % f == 0]
    fitting = [f for f in cands if f * bytes_per_from_row <= budget_bytes]
    return max(fitting) if fitting else min(cands)


# ------------------------------- wrapper ------------------------------------ #

def gate_attention_forward(att_probs, tensor, pos, params, *,
                           should_gate, from_len, to_len, num_heads, gate_bias):
    """Mirrors GateAttention.forward with one fused Pallas kernel."""
    if not should_gate:
        return att_probs

    B, H, F_att, T_att = att_probs.shape
    assert H == num_heads, "att_probs head dim must equal num_heads"
    assert from_len in (1, F_att), "gate from_len must be 1 or att_probs.shape[2]"
    assert to_len in (1, T_att), "gate to_len must be 1 or att_probs.shape[3]"

    in_dtype = tensor.dtype
    S = from_len * to_len
    assert tensor.shape[0] == B * S, "tensor rows must equal B*from_len*to_len"

    # get_param semantics: weight * runtime_coef; fold both biases + gate_bias
    # into one extra weight column paired with a ones input column.
    wg = params["gate_w"] * params["gate_w_gain"]                    # (H, dim)
    bias = params["gate_b"] * params["gate_b_gain"]                  # (H,)
    if pos is not None:
        wp = params["gate_pos_w"] * params["gate_pos_w_gain"]        # (H, pos_dim)
        bias = bias + params["gate_pos_b"] * params["gate_pos_b_gain"]
        w_all = jnp.concatenate([wg, wp], axis=1)
        x_all = jnp.concatenate([tensor, pos], axis=-1)
    else:
        w_all, x_all = wg, tensor
    bias = bias + jnp.float32(gate_bias)
    w_aug = jnp.concatenate([w_all, bias[:, None]], axis=1).astype(in_dtype)
    x_aug = jnp.concatenate(
        [x_all, jnp.ones((x_all.shape[0], 1), in_dtype)], axis=-1)
    Daug = x_aug.shape[-1]
    x3 = x_aug.reshape(B, S, Daug)

    # Grid over (batch, from-tiles of att). Gate inputs for to-gates are shared
    # across from-tiles (recomputing the tiny gate per tile is cheaper than an
    # HBM round-trip).
    f_tile = _pick_from_tile(F_att, H * T_att * att_probs.dtype.itemsize)
    n_f = F_att // f_tile
    sx = to_len if from_len == 1 else f_tile * to_len
    if from_len == 1:
        x_index = lambda b, f: (b, 0, 0)
    else:
        x_index = lambda b, f: (b, f, 0)

    kernel = functools.partial(_fused_gate_attention_kernel,
                               from_len=from_len, to_len=to_len)
    return pl.pallas_call(
        kernel,
        out_shape=jax.ShapeDtypeStruct(att_probs.shape, att_probs.dtype),
        grid=(B, n_f),
        in_specs=[
            pl.BlockSpec((1, sx, Daug), x_index),
            pl.BlockSpec((num_heads, Daug), lambda b, f: (0, 0)),
            pl.BlockSpec((1, num_heads, f_tile, T_att), lambda b, f: (b, 0, f, 0)),
        ],
        out_specs=pl.BlockSpec((1, num_heads, f_tile, T_att),
                               lambda b, f: (b, 0, f, 0)),
        compiler_params=pltpu.CompilerParams(
            dimension_semantics=("parallel", "parallel")),
    )(x3, w_aug, att_probs)


# --------------------------- pure-JAX reference ----------------------------- #

def gate_attention_reference(att_probs, tensor, pos, params, *,
                             from_len, to_len, num_heads, gate_bias):
    wg = params["gate_w"] * params["gate_w_gain"]
    bg = params["gate_b"] * params["gate_b_gain"]
    g = tensor @ wg.T + bg
    if pos is not None:
        wp = params["gate_pos_w"] * params["gate_pos_w_gain"]
        bp = params["gate_pos_b"] * params["gate_pos_b_gain"]
        g = g + pos @ wp.T + bp
    g = jax.nn.sigmoid(g + gate_bias)
    g = g.reshape(-1, from_len, to_len, num_heads).transpose(0, 3, 1, 2)
    return att_probs * g


# ---------------------------------- main ------------------------------------ #

if __name__ == "__main__":
    key = jax.random.PRNGKey(0)
    k_att, k_w, k_wp, k_t1, k_p1, k_t2, k_p2 = jax.random.split(key, 7)

    B, num_heads = 2, 4
    dim, pos_dim = 32, 16
    F_att, T_att = 8, 16
    gate_bias = 1.0

    # get_weight / get_bias semantics: w ~ N(0,1) (init_std = 1/lrmul = 1),
    # runtime_coef = 1/sqrt(fan_in); bias init 0, b_gain = lrmul = 1.
    params = {
        "gate_w": jax.random.normal(k_w, (num_heads, dim), jnp.float32),
        "gate_w_gain": jnp.float32(1.0 / math.sqrt(dim)),
        "gate_b": jnp.zeros((num_heads,), jnp.float32),
        "gate_b_gain": jnp.float32(1.0),
        "gate_pos_w": jax.random.normal(k_wp, (num_heads, pos_dim), jnp.float32),
        "gate_pos_w_gain": jnp.float32(1.0 / math.sqrt(pos_dim)),
        "gate_pos_b": jnp.zeros((num_heads,), jnp.float32),
        "gate_pos_b_gain": jnp.float32(1.0),
    }

    att_probs = jax.nn.softmax(
        jax.random.normal(k_att, (B, num_heads, F_att, T_att), jnp.float32),
        axis=-1)

    cases = [
        ("from-gate", F_att, 1, k_t1, k_p1),   # gate per from-position
        ("to-gate", 1, T_att, k_t2, k_p2),     # gate per to-position
    ]
    for name, from_len, to_len, kt, kp in cases:
        N = B * from_len * to_len
        tensor = jax.random.normal(kt, (N, dim), jnp.float32)
        pos = jax.random.normal(kp, (N, pos_dim), jnp.float32)

        out = gate_attention_forward(
            att_probs, tensor, pos, params,
            should_gate=True, from_len=from_len, to_len=to_len,
            num_heads=num_heads, gate_bias=gate_bias)
        out = jax.block_until_ready(out)

        ref = gate_attention_reference(
            att_probs, tensor, pos, params,
            from_len=from_len, to_len=to_len, num_heads=num_heads,
            gate_bias=gate_bias)

        assert out.shape == att_probs.shape and out.dtype == att_probs.dtype
        err = jnp.max(jnp.abs(out - ref))
        assert jnp.allclose(out, ref, atol=1e-5, rtol=1e-5), \
            f"{name}: max abs err = {err}"

    print("KERNEL_OK")
</pallas_src>

<mosaic_0001>
module attributes {stable_mosaic.version = 11 : i64} {
  func.func @_fused_gate_attention_kernel(%arg0: i32, %arg1: i32, %arg2: memref<1x8x49xf32, #tpu.memory_space<vmem>>, %arg3: memref<4x49xf32, #tpu.memory_space<vmem>>, %arg4: memref<1x4x8x16xf32, #tpu.memory_space<vmem>>, %arg5: memref<1x4x8x16xf32, #tpu.memory_space<vmem>>) attributes {dimension_semantics = [#tpu.dimension_semantics<parallel>, #tpu.dimension_semantics<parallel>], iteration_bounds = array<i64: 2, 1>, scalar_prefetch = 0 : i64, scratch_operands = 0 : i64, tpu.core_type = #tpu.core_type<tc>, window_params = [{transform_indices = @transform_0, window_bounds = array<i64: 1, 8, 49>}, {pipeline_mode = #tpu.pipeline_mode<synchronous>, transform_indices = @transform_1, window_bounds = array<i64: 4, 49>}, {transform_indices = @transform_2, window_bounds = array<i64: 1, 4, 8, 16>}, {transform_indices = @transform_3, window_bounds = array<i64: 1, 4, 8, 16>}]} {
    %c0 = arith.constant 0 : index
    %c0_0 = arith.constant 0 : index
    %c0_1 = arith.constant 0 : index
    %0 = vector.load %arg2[%c0, %c0_0, %c0_1] : memref<1x8x49xf32, #tpu.memory_space<vmem>>, vector<1x8x49xf32>
    %1 = vector.shape_cast %0 : vector<1x8x49xf32> to vector<8x49xf32>
    %c0_2 = arith.constant 0 : index
    %c0_3 = arith.constant 0 : index
    %2 = vector.load %arg3[%c0_2, %c0_3] : memref<4x49xf32, #tpu.memory_space<vmem>>, vector<4x49xf32>
    %cst = arith.constant dense<0.000000e+00> : vector<8x4xf32>
    %3 = tpu.matmul %1, %2, %cst {dimension_numbers = #tpu.dot_dimension_numbers<[1], [1], [0], [0], [0, 0, 1, 0], [], []>} : vector<8x49xf32>, vector<4x49xf32>, vector<8x4xf32> -> vector<8x4xf32>
    %4 = arith.negf %3 : vector<8x4xf32>
    %5 = math.exp %4 : vector<8x4xf32>
    %cst_4 = arith.constant 1.000000e+00 : f32
    %6 = vector.broadcast %cst_4 : f32 to vector<8x4xf32>
    %7 = arith.addf %6, %5 : vector<8x4xf32>
    %8 = arith.divf %6, %7 : vector<8x4xf32>
    %c0_5 = arith.constant 0 : index
    %c0_6 = arith.constant 0 : index
    %c0_7 = arith.constant 0 : index
    %c0_8 = arith.constant 0 : index
    %9 = vector.load %arg4[%c0_5, %c0_6, %c0_7, %c0_8] : memref<1x4x8x16xf32, #tpu.memory_space<vmem>>, vector<1x1x8x16xf32>
    %10 = vector.shape_cast %9 : vector<1x1x8x16xf32> to vector<8x16xf32>
    %11 = vector.extract_strided_slice %8 {offsets = [0, 0], sizes = [8, 1], strides = [1, 1]} : vector<8x4xf32> to vector<8x1xf32>
    %12 = vector.broadcast %11 : vector<8x1xf32> to vector<8x16xf32>
    %13 = arith.mulf %10, %12 : vector<8x16xf32>
    %c0_9 = arith.constant 0 : index
    %c0_10 = arith.constant 0 : index
    %c0_11 = arith.constant 0 : index
    %c0_12 = arith.constant 0 : index
    %14 = vector.load %arg5[%c0_9, %c0_10, %c0_11, %c0_12] : memref<1x4x8x16xf32, #tpu.memory_space<vmem>>, vector<1x1x8x16xf32>
    %15 = vector.shape_cast %14 : vector<1x1x8x16xf32> to vector<8x16xf32>
    %16 = vector.shape_cast %13 : vector<8x16xf32> to vector<1x1x8x16xf32>
    tpu.vector_store %arg5[%c0_9, %c0_10, %c0_11, %c0_12], %16 {strides = array<i32>} : memref<1x4x8x16xf32, #tpu.memory_space<vmem>>, vector<1x1x8x16xf32>,
    %c0_13 = arith.constant 0 : index
    %c1 = arith.constant 1 : index
    %c0_14 = arith.constant 0 : index
    %c0_15 = arith.constant 0 : index
    %17 = vector.load %arg4[%c0_13, %c1, %c0_14, %c0_15] : memref<1x4x8x16xf32, #tpu.memory_space<vmem>>, vector<1x1x8x16xf32>
    %18 = vector.shape_cast %17 : vector<1x1x8x16xf32> to vector<8x16xf32>
    %19 = vector.extract_strided_slice %8 {offsets = [0, 1], sizes = [8, 1], strides = [1, 1]} : vector<8x4xf32> to vector<8x1xf32>
    %20 = vector.broadcast %19 : vector<8x1xf32> to vector<8x16xf32>
    %21 = arith.mulf %18, %20 : vector<8x16xf32>
    %c0_16 = arith.constant 0 : index
    %c1_17 = arith.constant 1 : index
    %c0_18 = arith.constant 0 : index
    %c0_19 = arith.constant 0 : index
    %22 = vector.load %arg5[%c0_16, %c1_17, %c0_18, %c0_19] : memref<1x4x8x16xf32, #tpu.memory_space<vmem>>, vector<1x1x8x16xf32>
    %23 = vector.shape_cast %22 : vector<1x1x8x16xf32> to vector<8x16xf32>
    %24 = vector.shape_cast %21 : vector<8x16xf32> to vector<1x1x8x16xf32>
    tpu.vector_store %arg5[%c0_16, %c1_17, %c0_18, %c0_19], %24 {strides = array<i32>} : memref<1x4x8x16xf32, #tpu.memory_space<vmem>>, vector<1x1x8x16xf32>,
    %c0_20 = arith.constant 0 : index
    %c2 = arith.constant 2 : index
    %c0_21 = arith.constant 0 : index
    %c0_22 = arith.constant 0 : index
    %25 = vector.load %arg4[%c0_20, %c2, %c0_21, %c0_22] : memref<1x4x8x16xf32, #tpu.memory_space<vmem>>, vector<1x1x8x16xf32>
    %26 = vector.shape_cast %25 : vector<1x1x8x16xf32> to vector<8x16xf32>
    %27 = vector.extract_strided_slice %8 {offsets = [0, 2], sizes = [8, 1], strides = [1, 1]} : vector<8x4xf32> to vector<8x1xf32>
    %28 = vector.broadcast %27 : vector<8x1xf32> to vector<8x16xf32>
    %29 = arith.mulf %26, %28 : vector<8x16xf32>
    %c0_23 = arith.constant 0 : index
    %c2_24 = arith.constant 2 : index
    %c0_25 = arith.constant 0 : index
    %c0_26 = arith.constant 0 : index
    %30 = vector.load %arg5[%c0_23, %c2_24, %c0_25, %c0_26] : memref<1x4x8x16xf32, #tpu.memory_space<vmem>>, vector<1x1x8x16xf32>
    %31 = vector.shape_cast %30 : vector<1x1x8x16xf32> to vector<8x16xf32>
    %32 = vector.shape_cast %29 : vector<8x16xf32> to vector<1x1x8x16xf32>
    tpu.vector_store %arg5[%c0_23, %c2_24, %c0_25, %c0_26], %32 {strides = array<i32>} : memref<1x4x8x16xf32, #tpu.memory_space<vmem>>, vector<1x1x8x16xf32>,
    %c0_27 = arith.constant 0 : index
    %c3 = arith.constant 3 : index
    %c0_28 = arith.constant 0 : index
    %c0_29 = arith.constant 0 : index
    %33 = vector.load %arg4[%c0_27, %c3, %c0_28, %c0_29] : memref<1x4x8x16xf32, #tpu.memory_space<vmem>>, vector<1x1x8x16xf32>
    %34 = vector.shape_cast %33 : vector<1x1x8x16xf32> to vector<8x16xf32>
    %35 = vector.extract_strided_slice %8 {offsets = [0, 3], sizes = [8, 1], strides = [1, 1]} : vector<8x4xf32> to vector<8x1xf32>
    %36 = vector.broadcast %35 : vector<8x1xf32> to vector<8x16xf32>
    %37 = arith.mulf %34, %36 : vector<8x16xf32>
    %c0_30 = arith.constant 0 : index
    %c3_31 = arith.constant 3 : index
    %c0_32 = arith.constant 0 : index
    %c0_33 = arith.constant 0 : index
    %38 = vector.load %arg5[%c0_30, %c3_31, %c0_32, %c0_33] : memref<1x4x8x16xf32, #tpu.memory_space<vmem>>, vector<1x1x8x16xf32>
    %39 = vector.shape_cast %38 : vector<1x1x8x16xf32> to vector<8x16xf32>
    %40 = vector.shape_cast %37 : vector<8x16xf32> to vector<1x1x8x16xf32>
    tpu.vector_store %arg5[%c0_30, %c3_31, %c0_32, %c0_33], %40 {strides = array<i32>} : memref<1x4x8x16xf32, #tpu.memory_space<vmem>>, vector<1x1x8x16xf32>,
    return
  }
  func.func @transform_0(%arg0: i32, %arg1: i32) -> (i32, i32, i32) {
    %c0_i32 = arith.constant 0 : i32
    %c0_i32_0 = arith.constant 0 : i32
    return %arg0, %arg1, %c0_i32 : i32, i32, i32
  }
  func.func @transform_1(%arg0: i32, %arg1: i32) -> (i32, i32) {
    %c0_i32 = arith.constant 0 : i32
    %c0_i32_0 = arith.constant 0 : i32
    %c0_i32_1 = arith.constant 0 : i32
    return %c0_i32, %c0_i32_0 : i32, i32
  }
  func.func @transform_2(%arg0: i32, %arg1: i32) -> (i32, i32, i32, i32) {
    %c0_i32 = arith.constant 0 : i32
    %c0_i32_0 = arith.constant 0 : i32
    %c0_i32_1 = arith.constant 0 : i32
    return %arg0, %c0_i32, %arg1, %c0_i32_0 : i32, i32, i32, i32
  }
  func.func @transform_3(%arg0: i32, %arg1: i32) -> (i32, i32, i32, i32) {
    %c0_i32 = arith.constant 0 : i32
    %c0_i32_0 = arith.constant 0 : i32
    %c0_i32_1 = arith.constant 0 : i32
    return %arg0, %c0_i32, %arg1, %c0_i32_0 : i32, i32, i32, i32
  }
}

</mosaic_0001>

<llo_original>
// kernel: tpu_custom_call.1
$region0: #{tpu_custom_call.1}
  #allocation0 [shape = 'u32[]', space=smem, size = 0x4, offset = 0x4, fixed_abs, tag = 'smem constant byte address 0x4 - core index']
  #allocation1 [shape = 'u32[144,128]{1,0:T(1,128)}', space=vmem, size = 0x12000, scoped, tag = 'internal scratch']
  %s0 = inlined_call_operand.hbm [shape: f32[2,8,49], index: 0, kind: input, shape index: {}]
  %s1 = inlined_call_operand.hbm [shape: f32[4,49], index: 1, kind: input, shape index: {}]
  %s2 = inlined_call_operand.hbm [shape: f32[2,4,8,16], index: 2, kind: input, shape index: {}]
  %s3 = inlined_call_operand.hbm [shape: f32[2,4,8,16], index: 3, kind: output, shape index: {}]
  %s4 = sld [smem:[#allocation0]]
  $region57: #{tpu_custom_call.1} parent=0
    _
  %s6 = ssub.s32 1, %s4
  %s7 = scalar_select 0, %s6, %s4
  $region1: #{tpu_custom_call.1} parent=0
    #allocation2 [shape = 'u8[8192]{0}', space=vmem, size = 0x2000, scoped, tag = 'input window, operand 0']
    #allocation3 [shape = 's32[2]{0}', space=sflag, size = 0x8, scoped, tag = 'scoped memory for tpu_custom_call.1']
    #allocation4 [shape = 's32[2]{0}', space=sflag, size = 0x8, scoped, tag = 'scoped memory for tpu_custom_call.1']
    #allocation5 [shape = 'u8[2048]{0}', space=vmem, size = 0x800, scoped, tag = 'input window, operand 1, single buffered']
    #allocation6 [shape = 's32[1]{0}', space=sflag, size = 0x4, scoped, tag = 'scoped memory for tpu_custom_call.1']
    #allocation7 [shape = 'u8[32768]{0}', space=vmem, size = 0x8000, scoped, tag = 'input window, operand 2']
    #allocation8 [shape = 'u8[32768]{0}', space=vmem, size = 0x8000, scoped, tag = 'output window, operand 0']
    %8 = vsyncpa [#allocation3], 0
    %s9 = scalar_lea.sflag [#allocation3], 1
    %10 = vsyncpa %s9, 0
    %11 = vsyncpa [#allocation6], 0
    %12 = vsyncpa [#allocation4], 0
    %s13 = scalar_lea.sflag [#allocation4], 1
    %14 = vsyncpa %s13, 0
    loop: start=0, step=1, limit=4
    $region2: #{tpu_custom_call.1} parent=1 // loop_pre_header
      _
    $region3: #{tpu_custom_call.1} parent=1 // loop_header
      %s16 = sphi 0, %s20
      %p17 = scmp.ge.s32.totalorder %s16, 4
      %s23 = sphi 0, %s35
      %s24 = sphi 0, %s31
      %s25 = sphi 0, %s23
      %s26 = sphi 0, %s24
      %s27 = sphi 0, %s25
      %s28 = sphi 0, %s26
      %s40 = sphi 0, %s42
      %s43 = sphi 0, %s40
      %s44 = sphi 0, %s43
      %s60 = sphi 0, %s44
      %s64 = sphi 0, %s64
      %s66 = sphi 0, %s64
      %s67 = sphi 0, %s66
      %s81 = sphi 0, %s67
      %s89 = sphi 0, %s91
      %s92 = sphi 0, %s89
      %s93 = sphi 0, %s92
      %s109 = sphi 0, %s93
      %s117 = sphi 0, %s119
      %s120 = sphi 0, %s117
      %s121 = sphi 0, %s120
      %s137 = sphi 0, %s121
    $region4: #{tpu_custom_call.1} parent=1 // loop_header_branch
      %19 = sbr.rel (%p17) target = $region8
    $region5: #{tpu_custom_call.1} parent=1 // loop_body
      %s21 = ssub.s32 %s16, 1
      %s22 = ssub.s32 %s16, 2
      %s29 = sadd.s32 1, %s24
      %p30 = scmp.ge.s32.totalorder %s29, 1
      %s31 = scalar_select %p30, 0, %s29
      %s32 = sadd.s32 1, %s23
      %s33 = scalar_select %p30, %s32, %s23
      %p34 = scmp.ge.s32.totalorder %s33, 2
      %s35 = scalar_select %p34, 0, %s33
      %s36 = ssub.s32 %s23, %s35
      %s37 = ssub.s32 %s24, %s31
      %s38 = sor.u32 %s36, %s37
      %p39 = scmp.eq.s32.totalorder %s38, 0
      %s41 = sadd.s32 %s40, 1
      %s42 = scalar_select %p39, %s40, %s41
      %p45 = pneg %p39
      %p46 = scmp.eq.s32.totalorder %s16, 1
      %p47 = por %p45, %p46
      %p48 = scmp.ne.s32.totalorder %s40, %s43
      %p49 = scmp.eq.s32.totalorder %s16, 0
      %p50 = por %p48, %p49
      %p51 = scmp.ne.s32.totalorder %s40, %s43
      %p52 = scmp.eq.s32.totalorder %s21, 1
      %p53 = por %p51, %p52
      %p54 = scmp.ne.s32.totalorder %s43, %s44
      %p55 = scmp.eq.s32.totalorder %s21, 0
      %p56 = por %p54, %p55
      %p57 = scmp.ne.s32.totalorder %s43, %s44
      %p58 = scmp.eq.s32.totalorder %s22, 1
      %p59 = por %p57, %p58
      %p61 = scmp.ne.s32.totalorder %s44, %s60
      %p62 = scmp.eq.s32.totalorder %s22, 0
      %p63 = por %p61, %p62
      %s65 = sadd.s32 %s64, 1
      %p68 = scmp.eq.s32.totalorder %s16, 1
      %p69 = scmp.ne.s32.totalorder %s64, %s66
      %p70 = scmp.eq.s32.totalorder %s16, 0
      %p71 = por %p69, %p70
      %p72 = scmp.ne.s32.totalorder %s64, %s66
      %p73 = scmp.eq.s32.totalorder %s21, 1
      %p74 = por %p72, %p73
      %p75 = scmp.ne.s32.totalorder %s66, %s67
      %p76 = scmp.eq.s32.totalorder %s21, 0
      %p77 = por %p75, %p76
      %p78 = scmp.ne.s32.totalorder %s66, %s67
      %p79 = scmp.eq.s32.totalorder %s22, 1
      %p80 = por %p78, %p79
      %p82 = scmp.ne.s32.totalorder %s67, %s81
      %p83 = scmp.eq.s32.totalorder %s22, 0
      %p84 = por %p82, %p83
      %s85 = ssub.s32 %s23, %s35
      %s86 = ssub.s32 %s24, %s31
      %s87 = sor.u32 %s85, %s86
      %p88 = scmp.eq.s32.totalorder %s87, 0
      %s90 = sadd.s32 %s89, 1
      %s91 = scalar_select %p88, %s89, %s90
      %p94 = pneg %p88
      %p95 = scmp.eq.s32.totalorder %s16, 1
      %p96 = por %p94, %p95
      %p97 = scmp.ne.s32.totalorder %s89, %s92
      %p98 = scmp.eq.s32.totalorder %s16, 0
      %p99 = por %p97, %p98
      %p100 = scmp.ne.s32.totalorder %s89, %s92
      %p101 = scmp.eq.s32.totalorder %s21, 1
      %p102 = por %p100, %p101
      %p103 = scmp.ne.s32.totalorder %s92, %s93
      %p104 = scmp.eq.s32.totalorder %s21, 0
      %p105 = por %p103, %p104
      %p106 = scmp.ne.s32.totalorder %s92, %s93
      %p107 = scmp.eq.s32.totalorder %s22, 1
      %p108 = por %p106, %p107
      %p110 = scmp.ne.s32.totalorder %s93, %s109
      %p111 = scmp.eq.s32.totalorder %s22, 0
      %p112 = por %p110, %p111
      %s113 = ssub.s32 %s23, %s35
      %s114 = ssub.s32 %s24, %s31
      %s115 = sor.u32 %s113, %s114
      %p116 = scmp.eq.s32.totalorder %s115, 0
      %s118 = sadd.s32 %s117, 1
      %s119 = scalar_select %p116, %s117, %s118
      %p122 = pneg %p116
      %p123 = scmp.eq.s32.totalorder %s16, 1
      %p124 = por %p122, %p123
      %p125 = scmp.ne.s32.totalorder %s117, %s120
      %p126 = scmp.eq.s32.totalorder %s16, 0
      %p127 = por %p125, %p126
      %p128 = scmp.ne.s32.totalorder %s117, %s120
      %p129 = scmp.eq.s32.totalorder %s21, 1
      %p130 = por %p128, %p129
      %p131 = scmp.ne.s32.totalorder %s120, %s121
      %p132 = scmp.eq.s32.totalorder %s21, 0
      %p133 = por %p131, %p132
      %p134 = scmp.ne.s32.totalorder %s120, %s121
      %p135 = scmp.eq.s32.totalorder %s22, 1
      %p136 = por %p134, %p135
      %p138 = scmp.ne.s32.totalorder %s121, %s137
      %p139 = scmp.eq.s32.totalorder %s22, 0
      %p140 = por %p138, %p139
      %p141 = scmp.le.s32.totalorder 1, %s16
      %p142 = scmp.lt.s32.totalorder %s16, 3
      %p143 = pnand %p141, %p142
      %p144 = pneg %p143
      // Predicated region
      $region9: #{tpu_custom_call.1} parent=5 // pred_check
        _
      $region10: #{tpu_custom_call.1} parent=5 // pred_check_branch
        %146 = sbr.rel (%p143) target = $region12
      $region11: #{tpu_custom_call.1} parent=5 // pred_region
        %s147 = ssub.s32 %s16, 1
        // Predicated region
        $region13: #{tpu_custom_call.1} parent=11 // pred_check
          %p148 = pneg %p77
        $region14: #{tpu_custom_call.1} parent=11 // pred_check_branch
          %150 = sbr.rel (%p148) target = $region16
        $region15: #{tpu_custom_call.1} parent=11 // pred_region
          %s152 = ssub.s32 64, 64
          %153 = vsyncadd [#allocation6], %s152
          %s155 = sshll.u32 [#allocation5], 4
          %s156 = int_to_ptr.vmem [resolvable:$true] %s155
          %158 = dma.hbm_to_vmem [thread:$0]  %s1, 64, %s156, [#allocation6]
        $region16: #{tpu_custom_call.1} parent=11 // pred_fallthru
          _
      $region12: #{tpu_custom_call.1} parent=5 // pred_fallthru
        _
      %p159 = scmp.lt.s32.totalorder %s16, 2
      // Predicated region
      $region17: #{tpu_custom_call.1} parent=5 // pred_check
        %p160 = pneg %p159
      $region18: #{tpu_custom_call.1} parent=5 // pred_check_branch
        %162 = sbr.rel (%p160) target = $region20
      $region19: #{tpu_custom_call.1} parent=5 // pred_region
        // Predicated region
        $region21: #{tpu_custom_call.1} parent=19 // pred_check
          %p163 = pneg %p50
        $region22: #{tpu_custom_call.1} parent=19 // pred_check_branch
          %165 = sbr.rel (%p163) target = $region24
        $region23: #{tpu_custom_call.1} parent=19 // pred_region
          %s166 = sand.u32 %s16, 1
          %s167 = scalar_lea.sflag [#allocation3], %s166
          %s168 = sand.u32 %s40, 1
          %s169 = smul.addr %s168, 8
          %s170 = scalar_lea.vmem [#allocation2], %s169
          %s172 = ssub.s32 128, 128
          %173 = vsyncadd %s167, %s172
          %s174 = sadd.s32 %s24, %s23
          %s175 = smul.addr %s174, 128
          %s176 = scalar_lea.hbm %s0, %s175
          %s178 = sshll.u32 %s170, 4
          %s179 = int_to_ptr.vmem [resolvable:$true] %s178
          %181 = dma.hbm_to_vmem [thread:$0]  %s176, 128, %s179, %s167
        $region24: #{tpu_custom_call.1} parent=19 // pred_fallthru
          _
        // Predicated region
        $region25: #{tpu_custom_call.1} parent=19 // pred_check
          %p182 = pneg %p99
        $region26: #{tpu_custom_call.1} parent=19 // pred_check_branch
          %184 = sbr.rel (%p182) target = $region28
        $region27: #{tpu_custom_call.1} parent=19 // pred_region
          %s185 = sand.u32 %s16, 1
          %s186 = scalar_lea.sflag [#allocation3], %s185
          %s187 = sand.u32 %s89, 1
          %s188 = smul.addr %s187, 32
          %s189 = scalar_lea.vmem [#allocation7], %s188
          %s191 = ssub.s32 512, 512
          %192 = vsyncadd %s186, %s191
          %s193 = smul.addr %s23, 4
          %s194 = sadd.s32 %s24, %s193
          %s195 = smul.addr %s194, 128
          %s196 = scalar_lea.hbm %s2, %s195
          %s197 = sshll.u32 %s189, 4
          %s198 = int_to_ptr.vmem [resolvable:$true] %s197
          %203 = dma.hbm_to_vmem [thread:$0]  %s196, 512, %s198, %s186, 128, 128, 8
        $region28: #{tpu_custom_call.1} parent=19 // pred_fallthru
          _
      $region20: #{tpu_custom_call.1} parent=5 // pred_fallthru
        _
      %p204 = scmp.le.s32.totalorder 1, %s16
      %p205 = scmp.lt.s32.totalorder %s16, 3
      %p206 = pnand %p204, %p205
      %p207 = pneg %p206
      // Predicated region
      $region29: #{tpu_custom_call.1} parent=5 // pred_check
        _
      $region30: #{tpu_custom_call.1} parent=5 // pred_check_branch
        %209 = sbr.rel (%p206) target = $region32
      $region31: #{tpu_custom_call.1} parent=5 // pred_region
        %s210 = ssub.s32 %s16, 1
        %s211 = sand.u32 %s21, 1
        %s212 = scalar_lea.sflag [#allocation3], %s211
        %s213 = sand.u32 %s43, 1
        %s214 = smul.addr %s213, 8
        %s215 = scalar_lea.vmem [#allocation2], %s214
        // Predicated region
        $region33: #{tpu_custom_call.1} parent=31 // pred_check
          %p216 = pneg %p56
        $region34: #{tpu_custom_call.1} parent=31 // pred_check_branch
          %218 = sbr.rel (%p216) target = $region36
        $region35: #{tpu_custom_call.1} parent=31 // pred_region
          %219 = dma.done %s212, 128
        $region36: #{tpu_custom_call.1} parent=31 // pred_fallthru
          _
        // Predicated region
        $region37: #{tpu_custom_call.1} parent=31 // pred_check
          %p220 = pneg %p77
        $region38: #{tpu_custom_call.1} parent=31 // pred_check_branch
          %222 = sbr.rel (%p220) target = $region40
        $region39: #{tpu_custom_call.1} parent=31 // pred_region
          %223 = dma.done [#allocation6], 64
        $region40: #{tpu_custom_call.1} parent=31 // pred_fallthru
          _
        %s224 = sand.u32 %s21, 1
        %s225 = scalar_lea.sflag [#allocation3], %s224
        %s226 = sand.u32 %s92, 1
        %s227 = smul.addr %s226, 32
        %s228 = scalar_lea.vmem [#allocation7], %s227
        // Predicated region
        $region41: #{tpu_custom_call.1} parent=31 // pred_check
          %p229 = pneg %p105
        $region42: #{tpu_custom_call.1} parent=31 // pred_check_branch
          %231 = sbr.rel (%p229) target = $region44
        $region43: #{tpu_custom_call.1} parent=31 // pred_region
          %232 = dma.done %s225, 512
        $region44: #{tpu_custom_call.1} parent=31 // pred_fallthru
          _
        %s233 = sand.u32 %s21, 1
        %s234 = scalar_lea.sflag [#allocation3], %s233
        %s235 = sand.u32 %s43, 1
        %s236 = smul.addr %s235, 8
        %s237 = scalar_lea.vmem [#allocation2], %s236
        %p238 = pneg %p56
        %p239 = pneg %p53
        %p240 = pneg %p77
        %p241 = pneg %p74
        %s242 = sand.u32 %s21, 1
        %s243 = scalar_lea.sflag [#allocation3], %s242
        %s244 = sand.u32 %s92, 1
        %s245 = smul.addr %s244, 32
        %s246 = scalar_lea.vmem [#allocation7], %s245
        %p247 = pneg %p105
        %p248 = pneg %p102
        %p249 = pneg %p133
        %p250 = pneg %p130
        %s251 = sand.u32 %s120, 1
        %s252 = scalar_lea.sflag [#allocation4], %s251
        %s253 = sand.u32 %s120, 1
        %s254 = smul.addr %s253, 32
        %s255 = scalar_lea.vmem [#allocation8], %s254
        %v256 = vld [vmem:[%s215] sm:$0xff]
        %v257 = vld [vmem:[#allocation5] sm:$0xf]
        %vm258 = vcmask 400384
        %v260 = vsel %vm258, %v256, 0
        %v263 = vsel %vm258, %v257, 0
        %265 = vmatprep.subr.mxu0 0.0
        %266 = vmatpush1.xpose.msra.mxu0 %v263
        %267 = vmatprep.subr.mxu0 0.0
        %268 = vmatpush1.xpose.msra.mxu0 0.0
        %269 = vmatprep.subr.mxu0 0.0
        %270 = vmatpush1.xpose.msra.mxu0 0.0
        %271 = vmatprep.subr.mxu0 0.0
        %272 = vmatpush1.xpose.msra.mxu0 0.0
        %273 = vmatprep.subr.mxu0 0.0
        %274 = vmatpush1.xpose.msra.mxu0 0.0
        %275 = vmatprep.subr.mxu0 0.0
        %276 = vmatpush1.xpose.msra.mxu0 0.0
        %277 = vmatprep.subr.mxu0 0.0
        %278 = vmatpush1.xpose.msra.mxu0 0.0
        %279 = vmatprep.subr.mxu0 0.0
        %280 = vmatpush1.xpose.msra.mxu0 0.0
        %281 = vmatprep.subr.mxu0 0.0
        %282 = vmatpush1.xpose.msra.mxu0 0.0
        %283 = vmatprep.subr.mxu0 0.0
        %284 = vmatpush1.xpose.msra.mxu0 0.0
        %285 = vmatprep.subr.mxu0 0.0
        %286 = vmatpush1.xpose.msra.mxu0 0.0
        %287 = vmatprep.subr.mxu0 0.0
        %288 = vmatpush1.xpose.msra.mxu0 0.0
        %289 = vmatprep.subr.mxu0 0.0
        %290 = vmatpush1.xpose.msra.mxu0 0.0
        %291 = vmatprep.subr.mxu0 0.0
        %292 = vmatpush1.xpose.msra.mxu0 0.0
        %293 = vmatprep.subr.mxu0 0.0
        %294 = vmatpush1.xpose.msra.mxu0 0.0
        %295 = vmatprep.subr.mxu0 0.0
        %296 = vmatpush1.xpose.msra.mxu0 0.0
        %297 = vmatprep.subr.mxu0 0.0
        %298 = vmatpush1.xpose.msra.mxu0 0.0
        %299 = vmatprep.subr.mxu0 0.0
        %300 = vmatpush1.xpose.msra.mxu0 0.0
        %301 = vmatprep.subr.mxu0 0.0
        %302 = vmatpush1.xpose.msra.mxu0 0.0
        %303 = vmatprep.subr.mxu0 0.0
        %304 = vmatpush1.xpose.msra.mxu0 0.0
        %305 = vmatprep.subr.mxu0 0.0
        %306 = vmatpush1.xpose.msra.mxu0 0.0
        %307 = vmatprep.subr.mxu0 0.0
        %308 = vmatpush1.xpose.msra.mxu0 0.0
        %309 = vmatprep.subr.mxu0 0.0
        %310 = vmatpush1.xpose.msra.mxu0 0.0
        %311 = vmatprep.subr.mxu0 0.0
        %312 = vmatpush1.xpose.msra.mxu0 0.0
        %313 = vmatprep.subr.mxu0 0.0
        %314 = vmatpush1.xpose.msra.mxu0 0.0
        %315 = vmatprep.subr.mxu0 0.0
        %316 = vmatpush1.xpose.msra.mxu0 0.0
        %317 = vmatprep.subr.mxu0 0.0
        %318 = vmatpush1.xpose.msra.mxu0 0.0
        %319 = vmatprep.subr.mxu0 0.0
        %320 = vmatpush1.xpose.msra.mxu0 0.0
        %321 = vmatprep.subr.mxu0 0.0
        %322 = vmatpush1.xpose.msra.mxu0 0.0
        %323 = vmatprep.subr.mxu0 0.0
        %324 = vmatpush1.xpose.msra.mxu0 0.0
        %325 = vmatprep.subr.mxu0 0.0
        %326 = vmatpush1.xpose.msra.mxu0 0.0
        %327 = vmatprep.subr.mxu0 0.0
        %328 = vmatpush1.xpose.msra.mxu0 0.0
        %329 = vmatprep.mubr.f32.mxu0 0.0
        %330 = vmatmul.mubr.f32.gmra.mrb[0].mxu0 %v260
        %v331 = vpop.f32.mrb[0].mxu0
        %v332 = vadd.f32 0.0, %v331
        %v333 = vpop.f32.mrb[0].mxu0
        %334 = vdwg.mxu0
        %v335 = vxor.u32 %v332, 2147483648
        %v336 = vmul.f32 %v335, 1.442695
        %v337 = vpow.pop %v336
        %v338 = vadd.f32 %v337, 1.0
        %v339 = vrcp.pop %v338
        %v340 = vmul.f32 1.0, %v339
        %v341 = vld [vmem:[%s228] sm:$0xff]
        %343 = vset.pattern.permute.xlu0 0
        %344 = vperm.xlu0 %343, %v340
        %v345 = vpop.permute.xlu0 %344
        %v347 = vmul.f32 %v341, %v345
        %vm348 = vcmask 130048
        %349 = vst.msk [vmem:[%s255] sm:$0xff] %vm348, %v347
        %s350 = scalar_lea.vmem %s228, 8 [#allocation7]
        %v351 = vld [vmem:[%s350] sm:$0xff]
        %352 = vset.pattern.permute.xlu0 1
        %353 = vperm.xlu0 %352, %v340
        %v354 = vpop.permute.xlu0 %353
        %v356 = vmul.f32 %v351, %v354
        %s357 = scalar_lea.vmem %s255, 8 [#allocation8]
        %358 = vst.msk [vmem:[%s357] sm:$0xff] %vm348, %v356
        %s359 = scalar_lea.vmem %s228, 16 [#allocation7]
        %v360 = vld [vmem:[%s359] sm:$0xff]
        %361 = vset.pattern.permute.xlu0 2
        %362 = vperm.xlu0 %361, %v340
        %v363 = vpop.permute.xlu0 %362
        %v365 = vmul.f32 %v360, %v363
        %s366 = scalar_lea.vmem %s255, 16 [#allocation8]
        %367 = vst.msk [vmem:[%s366] sm:$0xff] %vm348, %v365
        %s368 = scalar_lea.vmem %s228, 24 [#allocation7]
        %v369 = vld [vmem:[%s368] sm:$0xff]
        %370 = vset.pattern.permute.xlu0 3
        %371 = vperm.xlu0 %370, %v340
        %v372 = vpop.permute.xlu0 %371
        %v374 = vmul.f32 %v369, %v372
        %s375 = scalar_lea.vmem %s255, 24 [#allocation8]
        %376 = vst.msk [vmem:[%s375] sm:$0xff] %vm348, %v374
        %s377 = sand.u32 %s120, 1
        %s378 = scalar_lea.sflag [#allocation4], %s377
        %s379 = sand.u32 %s120, 1
        %s380 = smul.addr %s379, 32
        %s381 = scalar_lea.vmem [#allocation8], %s380
        // Predicated region
        $region45: #{tpu_custom_call.1} parent=31 // pred_check
          %p382 = pneg %p130
        $region46: #{tpu_custom_call.1} parent=31 // pred_check_branch
          %384 = sbr.rel (%p382) target = $region48
        $region47: #{tpu_custom_call.1} parent=31 // pred_region
          %s386 = ssub.s32 512, 512
          %387 = vsyncadd %s378, %s386
          %s388 = smul.addr %s25, 4
          %s389 = sadd.s32 %s26, %s388
          %s390 = smul.addr %s389, 128
          %s391 = scalar_lea.hbm %s3, %s390
          %s392 = sshll.u32 %s381, 4
          %s393 = int_to_ptr.vmem [resolvable:$true] %s392
          %398 = dma.vmem_to_hbm [thread:$0]  %s393, 512, %s391, %s378, 128, 128, 8
        $region48: #{tpu_custom_call.1} parent=31 // pred_fallthru
          _
      $region32: #{tpu_custom_call.1} parent=5 // pred_fallthru
        _
      %p399 = scmp.le.s32.totalorder 2, %s16
      // Predicated region
      $region49: #{tpu_custom_call.1} parent=5 // pred_check
        %p400 = pneg %p399
      $region50: #{tpu_custom_call.1} parent=5 // pred_check_branch
        %402 = sbr.rel (%p400) target = $region52
      $region51: #{tpu_custom_call.1} parent=5 // pred_region
        %s403 = ssub.s32 %s16, 2
        // Predicated region
        $region53: #{tpu_custom_call.1} parent=51 // pred_check
          %p404 = pneg %p136
        $region54: #{tpu_custom_call.1} parent=51 // pred_check_branch
          %406 = sbr.rel (%p404) target = $region56
        $region55: #{tpu_custom_call.1} parent=51 // pred_region
          %s407 = sand.u32 %s121, 1
          %s408 = scalar_lea.sflag [#allocation4], %s407
          %s409 = sand.u32 %s121, 1
          %s410 = smul.addr %s409, 32
          %s411 = scalar_lea.vmem [#allocation8], %s410
          %412 = dma.done %s408, 512
        $region56: #{tpu_custom_call.1} parent=51 // pred_fallthru
          _
      $region52: #{tpu_custom_call.1} parent=5 // pred_fallthru
        _
    $region6: #{tpu_custom_call.1} parent=1 // loop_footer
      %s20 = sadd.s32 1, %s16
    $region7: #{tpu_custom_call.1} parent=1 // loop_footer_branch
      %15 = sbr.rel target = $region3
    $region8: #{tpu_custom_call.1} parent=1 // loop_exit
      _
    %413 = vsyncpa [#allocation3], 1
    %s414 = scalar_lea.sflag [#allocation3], 1
    %415 = vsyncpa %s414, 1
    %416 = vsyncpa [#allocation6], 1
    %417 = vsyncpa [#allocation4], 1
    %s418 = scalar_lea.sflag [#allocation4], 1
    %419 = vsyncpa %s418, 1

</llo_original>
